<compile_context>
chip_gen: v6e
topology: v6e:2x2x1
jax: 0.10.0
libtpu: 0.0.40
codegen_flags: <defaults>
</compile_context>

<pallas_src>
import functools

import jax
import jax.numpy as jnp
from jax.experimental import pallas as pl
from jax.experimental.pallas import tpu as pltpu


# ---------------------------------------------------------------------------
# helpers
# ---------------------------------------------------------------------------
_SMALL_PATH_BYTES = 4 << 20   # whole-problem footprint below this -> single block
_MAX_TM = 256                 # row tile cap (full MXU height on v6e/v7x)
_MAX_TN = 512
_MAX_TK = 512


def _round_up(x, m):
    return ((x + m - 1) // m) * m


def _itemsize(dtype):
    return jnp.dtype(dtype).itemsize


def _linear_tiles(N, K, M):
    # A block dim equal to the full array dim has no (8,128) divisibility
    # requirement, so small batches use tm == N exactly (also enables BN fusion).
    tm = N if N <= _MAX_TM else _MAX_TM
    tn = M if M <= 128 else min(_round_up(M, 128), _MAX_TN)
    tk = K if K <= 128 else min(_round_up(K, 128), _MAX_TK)
    return tm, tn, tk


def _linear_vmem_bytes(tm, tn, tk, in_isz, out_isz):
    return (2 * tm * tk * in_isz        # x tiles (double buffered)
            + 2 * tk * tn * in_isz      # w tiles (double buffered)
            + 2 * tn * in_isz           # bias tile
            + 2 * tm * tn * out_isz     # output tiles (double buffered)
            + tm * tn * 4)              # f32 accumulator scratch


# ---------------------------------------------------------------------------
# Small-problem path: one block, one MXU call, fused bias (+ optional BN)
# ---------------------------------------------------------------------------
def _small_linear_kernel(x_ref, w_ref, b_ref, o_ref):
    y = jnp.dot(x_ref[...], w_ref[...], preferred_element_type=jnp.float32)
    y = y + b_ref[...].astype(jnp.float32)
    o_ref[...] = y.astype(o_ref.dtype)


def _small_linear_bn_kernel(x_ref, w_ref, b_ref, g_ref, bt_ref, o_ref, *, eps):
    y = jnp.dot(x_ref[...], w_ref[...], preferred_element_type=jnp.float32)
    y = y + b_ref[...].astype(jnp.float32)
    mean = jnp.mean(y, axis=0, keepdims=True)
    var = jnp.mean(jnp.square(y - mean), axis=0, keepdims=True)
    y = (y - mean) * jax.lax.rsqrt(var + eps)
    y = y * g_ref[...].astype(jnp.float32) + bt_ref[...].astype(jnp.float32)
    o_ref[...] = y.astype(o_ref.dtype)


# ---------------------------------------------------------------------------
# Tiled path: y = x @ Wt + b   (accumulator initialized with bias at k == 0)
# ---------------------------------------------------------------------------
def _linear_kernel(x_ref, w_ref, b_ref, o_ref, acc_ref):
    k = pl.program_id(2)

    @pl.when(k == 0)
    def _():
        acc_ref[...] = jnp.broadcast_to(
            b_ref[...].astype(jnp.float32), acc_ref.shape)

    acc_ref[...] += jnp.dot(x_ref[...], w_ref[...],
                            preferred_element_type=jnp.float32)

    @pl.when(k == pl.num_programs(2) - 1)
    def _():
        o_ref[...] = acc_ref[...].astype(o_ref.dtype)


def _linear_bn_kernel(x_ref, w_ref, b_ref, g_ref, bt_ref, o_ref, acc_ref, *, eps):
    # Requires the row tile to cover the whole batch (tm == N): the epilogue
    # computes per-feature batch statistics over the accumulator tile.
    k = pl.program_id(2)

    @pl.when(k == 0)
    def _():
        acc_ref[...] = jnp.broadcast_to(
            b_ref[...].astype(jnp.float32), acc_ref.shape)

    acc_ref[...] += jnp.dot(x_ref[...], w_ref[...],
                            preferred_element_type=jnp.float32)

    @pl.when(k == pl.num_programs(2) - 1)
    def _():
        y = acc_ref[...]
        mean = jnp.mean(y, axis=0, keepdims=True)
        var = jnp.mean(jnp.square(y - mean), axis=0, keepdims=True)  # biased, as torch training BN
        y = (y - mean) * jax.lax.rsqrt(var + eps)
        y = y * g_ref[...].astype(jnp.float32) + bt_ref[...].astype(jnp.float32)
        o_ref[...] = y.astype(o_ref.dtype)


# ---------------------------------------------------------------------------
# Stand-alone BatchNorm1d (training-mode batch stats), column-tiled
# ---------------------------------------------------------------------------
def _bn_kernel(y_ref, g_ref, bt_ref, o_ref, *, eps):
    y = y_ref[...].astype(jnp.float32)
    mean = jnp.mean(y, axis=0, keepdims=True)
    var = jnp.mean(jnp.square(y - mean), axis=0, keepdims=True)
    out = (y - mean) * jax.lax.rsqrt(var + eps)
    out = out * g_ref[...].astype(jnp.float32) + bt_ref[...].astype(jnp.float32)
    o_ref[...] = out.astype(o_ref.dtype)


def batchnorm1d_pallas(y, gamma, beta, *, eps=1e-5):
    """y: (N, M). Per-feature batch statistics; tiled over the feature axis."""
    N, M = y.shape
    isz = _itemsize(y.dtype)
    if M <= 128:
        tn = M
    else:
        tn = min(_MAX_TN, _round_up(M, 128))
        # keep (2 in + 2 out) double-buffered column slabs under ~24 MiB
        while tn > 128 and 4 * N * tn * isz > (24 << 20):
            tn = max(128, ((tn // 2) // 128) * 128)

    vmem_limit = min(48 << 20, max(16 << 20, 6 * N * tn * isz))
    return pl.pallas_call(
        functools.partial(_bn_kernel, eps=eps),
        out_shape=jax.ShapeDtypeStruct((N, M), y.dtype),
        grid_spec=pltpu.PrefetchScalarGridSpec(
            num_scalar_prefetch=0,
            grid=(pl.cdiv(M, tn),),
            in_specs=[
                pl.BlockSpec((N, tn), lambda j: (0, j)),
                pl.BlockSpec((1, tn), lambda j: (0, j)),
                pl.BlockSpec((1, tn), lambda j: (0, j)),
            ],
            out_specs=pl.BlockSpec((N, tn), lambda j: (0, j)),
        ),
        compiler_params=pltpu.CompilerParams(
            dimension_semantics=("parallel",),
            vmem_limit_bytes=vmem_limit,
        ),
    )(y, gamma.reshape(1, M), beta.reshape(1, M))


# ---------------------------------------------------------------------------
# Linear (+ optionally fused BN) wrapper
# ---------------------------------------------------------------------------
def linear_pallas(x, w_t, bias, *, gamma=None, beta=None, eps=1e-5, fuse_bn=False):
    """x: (N, K), w_t: (K, M), bias: (M,) -> (N, M); optional fused BatchNorm1d."""
    N, K = x.shape
    K2, M = w_t.shape
    assert K == K2, "weight must be pre-transposed to (feature_dim, bottleneck_dim)"
    in_isz = _itemsize(x.dtype)
    out_isz = in_isz
    bias2d = bias.reshape(1, M)
    if fuse_bn:
        gamma2d = gamma.reshape(1, M)
        beta2d = beta.reshape(1, M)

    # ---- tiny problems: single block, no grid, no scratch ----
    footprint = in_isz * (N * K + K * M + M) + out_isz * N * M + 4 * N * M
    if footprint <= _SMALL_PATH_BYTES:
        if fuse_bn:
            kernel = functools.partial(_small_linear_bn_kernel, eps=eps)
            args = (x, w_t, bias2d, gamma2d, beta2d)
        else:
            kernel = _small_linear_kernel
            args = (x, w_t, bias2d)
        return pl.pallas_call(
            kernel,
            out_shape=jax.ShapeDtypeStruct((N, M), x.dtype),
        )(*args)

    # ---- general tiled path ----
    tm, tn, tk = _linear_tiles(N, K, M)
    fuse_here = fuse_bn and tm == N          # BN needs the whole batch per row tile
    grid = (pl.cdiv(N, tm), pl.cdiv(M, tn), pl.cdiv(K, tk))

    in_specs = [
        pl.BlockSpec((tm, tk), lambda i, j, k: (i, k)),
        pl.BlockSpec((tk, tn), lambda i, j, k: (k, j)),
        pl.BlockSpec((1, tn), lambda i, j, k: (0, j)),
    ]
    args = [x, w_t, bias2d]
    if fuse_here:
        in_specs += [
            pl.BlockSpec((1, tn), lambda i, j, k: (0, j)),
            pl.BlockSpec((1, tn), lambda i, j, k: (0, j)),
        ]
        args += [gamma2d, beta2d]
        kernel = functools.partial(_linear_bn_kernel, eps=eps)
    else:
        kernel = _linear_kernel

    est = _linear_vmem_bytes(tm, tn, tk, in_isz, out_isz)
    vmem_limit = min(48 << 20, max(16 << 20, 2 * est))   # safe on v7x's 64 MiB VMEM

    y = pl.pallas_call(
        kernel,
        out_shape=jax.ShapeDtypeStruct((N, M), x.dtype),
        grid_spec=pltpu.PrefetchScalarGridSpec(
            num_scalar_prefetch=0,
            grid=grid,
            in_specs=in_specs,
            out_specs=pl.BlockSpec((tm, tn), lambda i, j, k: (i, j)),
            scratch_shapes=[pltpu.VMEM((tm, tn), jnp.float32)],
        ),
        compiler_params=pltpu.CompilerParams(
            dimension_semantics=("parallel", "parallel", "arbitrary"),
            vmem_limit_bytes=vmem_limit,
        ),
    )(*args)

    if fuse_bn and not fuse_here:
        # batch too large for a single row tile -> separate column-tiled BN kernel
        y = batchnorm1d_pallas(y, gamma, beta, eps=eps)
    return y


# ---------------------------------------------------------------------------
# feat_bottleneck forward
# ---------------------------------------------------------------------------
def feat_bottleneck_forward(x, params, btype="ori", eps=1e-5):
    if btype == "bn":
        # TODO(synk): PyTorch training-mode BatchNorm1d also updates
        # running_mean / running_var buffers; only the forward output is produced here.
        return linear_pallas(x, params["w_t"], params["b"],
                             gamma=params["gamma"], beta=params["beta"],
                             eps=eps, fuse_bn=True)
    return linear_pallas(x, params["w_t"], params["b"])


def init_params(key, feature_dim, bottleneck_dim, dtype=jnp.float32):
    kw, kb = jax.random.split(key)
    # PyTorch Linear default init: U(-1/sqrt(fan_in), 1/sqrt(fan_in))
    bound = 1.0 / jnp.sqrt(jnp.float32(feature_dim))
    w = jax.random.uniform(kw, (bottleneck_dim, feature_dim), dtype, -bound, bound)
    b = jax.random.uniform(kb, (bottleneck_dim,), dtype, -bound, bound)
    return {
        "w_t": w.T,                                       # (feature_dim, bottleneck_dim)
        "b": b,
        "gamma": jnp.ones((bottleneck_dim,), dtype),      # BatchNorm1d affine init
        "beta": jnp.zeros((bottleneck_dim,), dtype),
    }


# ---------------------------------------------------------------------------
# reference + test
# ---------------------------------------------------------------------------
def _reference(x, params, btype, eps=1e-5):
    y = jnp.dot(x, params["w_t"], precision=jax.lax.Precision.HIGHEST) + params["b"]
    if btype == "bn":
        mean = jnp.mean(y, axis=0, keepdims=True)
        var = jnp.mean(jnp.square(y - mean), axis=0, keepdims=True)
        y = (y - mean) * jax.lax.rsqrt(var + eps) * params["gamma"] + params["beta"]
    return y


def _run_case(key, N, feature_dim, bottleneck_dim, btype, atol, rtol, name):
    kx, kp, kg, kbt = jax.random.split(key, 4)
    x = jax.random.normal(kx, (N, feature_dim), jnp.float32)
    params = init_params(kp, feature_dim, bottleneck_dim)
    # non-trivial affine params so the BN affine path is actually exercised
    params["gamma"] = jax.random.uniform(kg, (bottleneck_dim,), jnp.float32, 0.5, 1.5)
    params["beta"] = 0.1 * jax.random.normal(kbt, (bottleneck_dim,), jnp.float32)

    y = jax.block_until_ready(feat_bottleneck_forward(x, params, btype=btype))
    ref = _reference(x, params, btype)
    assert y.shape == (N, bottleneck_dim), f"{name}: bad shape {y.shape}"
    err = jnp.max(jnp.abs(y - ref))
    assert jnp.allclose(y, ref, atol=atol, rtol=rtol), f"{name}: max |err| = {err}"


if __name__ == "__main__":
    key = jax.random.PRNGKey(0)
    k1, k2, k3, k4 = jax.random.split(key, 4)

    # 1) small demo shapes (single-block fast path), both 'ori' and 'bn'
    _run_case(k1, N=8, feature_dim=128, bottleneck_dim=256,
              btype="ori", atol=2e-2, rtol=2e-2, name="small-ori")
    _run_case(k2, N=8, feature_dim=128, bottleneck_dim=256,
              btype="bn", atol=2e-2, rtol=2e-2, name="small-bn")

    # 2) tiled path with BN fused into the matmul epilogue (grid over K)
    _run_case(k3, N=128, feature_dim=2048, bottleneck_dim=512,
              btype="bn", atol=2e-2, rtol=2e-2, name="tiled-fused-bn")

    # 3) tiled path with separate column-tiled BN (batch too large to fuse)
    _run_case(k4, N=1024, feature_dim=1024, bottleneck_dim=512,
              btype="bn", atol=2e-2, rtol=2e-2, name="tiled-split-bn")

    print("KERNEL_OK")
</pallas_src>

<mosaic_0001>
module attributes {stable_mosaic.version = 11 : i64} {
  func.func @_small_linear_kernel(%arg0: memref<8x128xf32, #tpu.memory_space<vmem>>, %arg1: memref<128x256xf32, #tpu.memory_space<vmem>>, %arg2: memref<1x256xf32, #tpu.memory_space<vmem>>, %arg3: memref<8x256xf32, #tpu.memory_space<vmem>>) attributes {dimension_semantics = [], scalar_prefetch = 0 : i64, scratch_operands = 0 : i64, tpu.core_type = #tpu.core_type<tc>} {
    %c0 = arith.constant 0 : index
    %c0_0 = arith.constant 0 : index
    %0 = vector.load %arg0[%c0, %c0_0] : memref<8x128xf32, #tpu.memory_space<vmem>>, vector<8x128xf32>
    %c0_1 = arith.constant 0 : index
    %c0_2 = arith.constant 0 : index
    %1 = vector.load %arg1[%c0_1, %c0_2] : memref<128x256xf32, #tpu.memory_space<vmem>>, vector<128x256xf32>
    %cst = arith.constant dense<0.000000e+00> : vector<8x256xf32>
    %2 = tpu.matmul %0, %1, %cst {dimension_numbers = #tpu.dot_dimension_numbers<[1], [0], [0], [1], [0, 0, 1, 1], [], []>} : vector<8x128xf32>, vector<128x256xf32>, vector<8x256xf32> -> vector<8x256xf32>
    %c0_3 = arith.constant 0 : index
    %c0_4 = arith.constant 0 : index
    %3 = vector.load %arg2[%c0_3, %c0_4] : memref<1x256xf32, #tpu.memory_space<vmem>>, vector<1x256xf32>
    %4 = vector.broadcast %3 : vector<1x256xf32> to vector<8x256xf32>
    %5 = arith.addf %2, %4 : vector<8x256xf32>
    %c0_5 = arith.constant 0 : index
    %c0_6 = arith.constant 0 : index
    %6 = vector.load %arg3[%c0_5, %c0_6] : memref<8x256xf32, #tpu.memory_space<vmem>>, vector<8x256xf32>
    tpu.vector_store %arg3[%c0_5, %c0_6], %5 {strides = array<i32>} : memref<8x256xf32, #tpu.memory_space<vmem>>, vector<8x256xf32>,
    return
  }
}

</mosaic_0001>

<llo_original>
// kernel: tpu_custom_call.1
$region0: #{tpu_custom_call.1}
  #allocation0 [shape = 'u32[]', space=smem, size = 0x4, offset = 0x4, fixed_abs, tag = 'smem constant byte address 0x4 - core index']
  #allocation1 [shape = 'u32[144,128]{1,0:T(1,128)}', space=vmem, size = 0x12000, scoped, tag = 'internal scratch']
  %s0 = inlined_call_operand.hbm [shape: f32[8,128], index: 0, kind: input, shape index: {}]
  %s1 = inlined_call_operand.hbm [shape: f32[128,256], index: 1, kind: input, shape index: {}]
  %s2 = inlined_call_operand.vmem [shape: f32[1,256], index: 2, kind: input, shape index: {}]
  %s3 = inlined_call_operand.hbm [shape: f32[8,256], index: 3, kind: output, shape index: {}]
  %s4 = sld [smem:[#allocation0]]
  $region30: #{tpu_custom_call.1} parent=0
    _
  %s6 = ssub.s32 1, %s4
  %s7 = scalar_select 0, %s6, %s4
  $region1: #{tpu_custom_call.1} parent=0
    #allocation2 [shape = 'u8[4096]{0}', space=vmem, size = 0x1000, scoped, tag = 'input window, operand 0, single buffered']
    #allocation3 [shape = 's32[1]{0}', space=sflag, size = 0x4, scoped, tag = 'scoped memory for tpu_custom_call.1']
    #allocation4 [shape = 's32[1]{0}', space=sflag, size = 0x4, scoped, tag = 'scoped memory for tpu_custom_call.1']
    #allocation5 [shape = 'u8[131072]{0}', space=vmem, size = 0x20000, scoped, tag = 'input window, operand 1, single buffered']
    #allocation6 [shape = 's32[1]{0}', space=sflag, size = 0x4, scoped, tag = 'scoped memory for tpu_custom_call.1']
    #allocation7 [shape = 'u8[8192]{0}', space=vmem, size = 0x2000, scoped, tag = 'output window, operand 0, single buffered']
    %8 = vsyncpa [#allocation3], 0
    %9 = vsyncpa [#allocation6], 0
    %10 = vsyncpa [#allocation4], 0
    // Predicated region
    $region2: #{tpu_custom_call.1} parent=1 // pred_check
      _
    $region3: #{tpu_custom_call.1} parent=1 // pred_check_branch
      %12 = sbr.rel (0) target = $region5
    $region4: #{tpu_custom_call.1} parent=1 // pred_region
      %s14 = ssub.s32 128, 128
      %15 = vsyncadd [#allocation3], %s14
      %s17 = sshll.u32 [#allocation2], 4
      %s18 = int_to_ptr.vmem [resolvable:$true] %s17
      %20 = dma.hbm_to_vmem [thread:$0]  %s0, 128, %s18, [#allocation3]
    $region5: #{tpu_custom_call.1} parent=1 // pred_fallthru
      _
    // Predicated region
    $region6: #{tpu_custom_call.1} parent=1 // pred_check
      _
    $region7: #{tpu_custom_call.1} parent=1 // pred_check_branch
      %22 = sbr.rel (0) target = $region9
    $region8: #{tpu_custom_call.1} parent=1 // pred_region
      %s24 = ssub.s32 4096, 4096
      %25 = vsyncadd [#allocation6], %s24
      %s26 = sshll.u32 [#allocation5], 4
      %s27 = int_to_ptr.vmem [resolvable:$true] %s26
      %32 = dma.hbm_to_vmem [thread:$0]  %s1, 4096, %s27, [#allocation6], 256, 256, 16
    $region9: #{tpu_custom_call.1} parent=1 // pred_fallthru
      _
    // Predicated region
    $region10: #{tpu_custom_call.1} parent=1 // pred_check
      _
    $region11: #{tpu_custom_call.1} parent=1 // pred_check_branch
      %34 = sbr.rel (0) target = $region13
    $region12: #{tpu_custom_call.1} parent=1 // pred_region
      _
    $region13: #{tpu_custom_call.1} parent=1 // pred_fallthru
      _
    // Predicated region
    $region14: #{tpu_custom_call.1} parent=1 // pred_check
      _
    $region15: #{tpu_custom_call.1} parent=1 // pred_check_branch
      %36 = sbr.rel (0) target = $region17
    $region16: #{tpu_custom_call.1} parent=1 // pred_region
      %37 = dma.done [#allocation3], 128
    $region17: #{tpu_custom_call.1} parent=1 // pred_fallthru
      _
    // Predicated region
    $region18: #{tpu_custom_call.1} parent=1 // pred_check
      _
    $region19: #{tpu_custom_call.1} parent=1 // pred_check_branch
      %39 = sbr.rel (0) target = $region21
    $region20: #{tpu_custom_call.1} parent=1 // pred_region
      %40 = dma.done [#allocation6], 4096
    $region21: #{tpu_custom_call.1} parent=1 // pred_fallthru
      _
    %v41 = vld [vmem:[#allocation2] sm:$0xff]
    %v42 = vld [vmem:[#allocation5] sm:$0xff]
    %v43 = vld [vmem:[#allocation5 + $0x8] sm:$0xff]
    %v44 = vld [vmem:[#allocation5 + $0x10] sm:$0xff]
    %v45 = vld [vmem:[#allocation5 + $0x18] sm:$0xff]
    %v46 = vld [vmem:[#allocation5 + $0x20] sm:$0xff]
    %v47 = vld [vmem:[#allocation5 + $0x28] sm:$0xff]
    %v48 = vld [vmem:[#allocation5 + $0x30] sm:$0xff]
    %v49 = vld [vmem:[#allocation5 + $0x38] sm:$0xff]
    %v50 = vld [vmem:[#allocation5 + $0x40] sm:$0xff]
    %v51 = vld [vmem:[#allocation5 + $0x48] sm:$0xff]
    %v52 = vld [vmem:[#allocation5 + $0x50] sm:$0xff]
    %v53 = vld [vmem:[#allocation5 + $0x58] sm:$0xff]
    %v54 = vld [vmem:[#allocation5 + $0x60] sm:$0xff]
    %v55 = vld [vmem:[#allocation5 + $0x68] sm:$0xff]
    %v56 = vld [vmem:[#allocation5 + $0x70] sm:$0xff]
    %v57 = vld [vmem:[#allocation5 + $0x78] sm:$0xff]
    %v58 = vld [vmem:[#allocation5 + $0x80] sm:$0xff]
    %v59 = vld [vmem:[#allocation5 + $0x88] sm:$0xff]
    %v60 = vld [vmem:[#allocation5 + $0x90] sm:$0xff]
    %v61 = vld [vmem:[#allocation5 + $0x98] sm:$0xff]
    %v62 = vld [vmem:[#allocation5 + $0xa0] sm:$0xff]
    %v63 = vld [vmem:[#allocation5 + $0xa8] sm:$0xff]
    %v64 = vld [vmem:[#allocation5 + $0xb0] sm:$0xff]
    %v65 = vld [vmem:[#allocation5 + $0xb8] sm:$0xff]
    %v66 = vld [vmem:[#allocation5 + $0xc0] sm:$0xff]
    %v67 = vld [vmem:[#allocation5 + $0xc8] sm:$0xff]
    %v68 = vld [vmem:[#allocation5 + $0xd0] sm:$0xff]
    %v69 = vld [vmem:[#allocation5 + $0xd8] sm:$0xff]
    %v70 = vld [vmem:[#allocation5 + $0xe0] sm:$0xff]
    %v71 = vld [vmem:[#allocation5 + $0xe8] sm:$0xff]
    %v72 = vld [vmem:[#allocation5 + $0xf0] sm:$0xff]
    %v73 = vld [vmem:[#allocation5 + $0xf8] sm:$0xff]
    %v74 = vld [vmem:[%s2] sm:$0x3]
    %v76 = vlaneseq
    %v77 = vshrl.u32 %v76, 7
    %v78 = vsub.s32 0, %v77
    %v79 = vrot.slane %v74, %v78
    %v80 = vlaneseq
    %v81 = vshrl.u32 %v80, 7
    %v82 = vsub.s32 1, %v81
    %v83 = vrot.slane %v74, %v82
    %86 = vmatprep.subr.mxu0 %v73
    %87 = vmatpush1.msra.mxu0 %v72
    %88 = vmatprep.subr.mxu0 %v71
    %89 = vmatpush1.msra.mxu0 %v70
    %90 = vmatprep.subr.mxu0 %v69
    %91 = vmatpush1.msra.mxu0 %v68
    %92 = vmatprep.subr.mxu0 %v67
    %93 = vmatpush1.msra.mxu0 %v66
    %94 = vmatprep.subr.mxu0 %v65
    %95 = vmatpush1.msra.mxu0 %v64
    %96 = vmatprep.subr.mxu0 %v63
    %97 = vmatpush1.msra.mxu0 %v62
    %98 = vmatprep.subr.mxu0 %v61
    %99 = vmatpush1.msra.mxu0 %v60
    %100 = vmatprep.subr.mxu0 %v59
    %101 = vmatpush1.msra.mxu0 %v58
    %102 = vmatprep.subr.mxu0 %v57
    %103 = vmatpush1.msra.mxu0 %v56
    %104 = vmatprep.subr.mxu0 %v55
    %105 = vmatpush1.msra.mxu0 %v54
    %106 = vmatprep.subr.mxu0 %v53
    %107 = vmatpush1.msra.mxu0 %v52
    %108 = vmatprep.subr.mxu0 %v51
    %109 = vmatpush1.msra.mxu0 %v50
    %110 = vmatprep.subr.mxu0 %v49
    %111 = vmatpush1.msra.mxu0 %v48
    %112 = vmatprep.subr.mxu0 %v47
    %113 = vmatpush1.msra.mxu0 %v46
    %114 = vmatprep.subr.mxu0 %v45
    %115 = vmatpush1.msra.mxu0 %v44
    %116 = vmatprep.subr.mxu0 %v43
    %117 = vmatpush1.msra.mxu0 %v42
    %118 = vmatprep.subr.mxu0 0.0
    %119 = vmatpush2.msra.mxu0 0.0
    %120 = vmatprep.subr.mxu0 0.0
    %121 = vmatpush2.msra.mxu0 0.0
    %122 = vmatprep.subr.mxu0 0.0
    %123 = vmatpush2.msra.mxu0 0.0
    %124 = vmatprep.subr.mxu0 0.0
    %125 = vmatpush2.msra.mxu0 0.0
    %126 = vmatprep.subr.mxu0 0.0
    %127 = vmatpush2.msra.mxu0 0.0
    %128 = vmatprep.subr.mxu0 0.0
    %129 = vmatpush2.msra.mxu0 0.0
    %130 = vmatprep.subr.mxu0 0.0
    %131 = vmatpush2.msra.mxu0 0.0
    %132 = vmatprep.subr.mxu0 0.0
    %133 = vmatpush2.msra.mxu0 0.0
    %134 = vmatprep.subr.mxu0 0.0
    %135 = vmatpush2.msra.mxu0 0.0
    %136 = vmatprep.subr.mxu0 0.0
    %137 = vmatpush2.msra.mxu0 0.0
    %138 = vmatprep.subr.mxu0 0.0
    %139 = vmatpush2.msra.mxu0 0.0
    %140 = vmatprep.subr.mxu0 0.0
    %141 = vmatpush2.msra.mxu0 0.0
    %142 = vmatprep.subr.mxu0 0.0
    %143 = vmatpush2.msra.mxu0 0.0
    %144 = vmatprep.subr.mxu0 0.0
    %145 = vmatpush2.msra.mxu0 0.0
    %146 = vmatprep.subr.mxu0 0.0
    %147 = vmatpush2.msra.mxu0 0.0
    %148 = vmatprep.subr.mxu0 0.0
    %149 = vmatpush2.msra.mxu0 0.0
    %150 = vmatprep.mubr.f32.mxu0 0.0
    %151 = vmatmul.mubr.f32.gmra.mxu0 %v41
    %v152 = vpop.f32.mrf.mxu0
    %v153 = vadd.f32 %v79, %v152
    %v154 = vpop.f32.mrf.mxu0
    %v155 = vadd.f32 %v83, %v154
    %156 = vdwg.mxu0
    %157 = vst [vmem:[#allocation7] sm:$0xff] %v153
    %158 = vst [vmem:[#allocation7 + $0x8] sm:$0xff] %v155
    // Predicated region
    $region22: #{tpu_custom_call.1} parent=1 // pred_check
      _
    $region23: #{tpu_custom_call.1} parent=1 // pred_check_branch
      %160 = sbr.rel (0) target = $region25
    $region24: #{tpu_custom_call.1} parent=1 // pred_region
      %s162 = ssub.s32 256, 256
      %163 = vsyncadd [#allocation4], %s162
      %s165 = sshll.u32 [#allocation7], 4
      %s166 = int_to_ptr.vmem [resolvable:$true] %s165
      %168 = dma.vmem_to_hbm [thread:$0]  %s166, 256, %s3, [#allocation4]
    $region25: #{tpu_custom_call.1} parent=1 // pred_fallthru
      _
    // Predicated region
    $region26: #{tpu_custom_call.1} parent=1 // pred_check
      _
    $region27: #{tpu_custom_call.1} parent=1 // pred_check_branch
      %170 = sbr.rel (0) target = $region29
    $region28: #{tpu_custom_call.1} parent=1 // pred_region
      %171 = dma.done [#allocation4], 256
    $region29: #{tpu_custom_call.1} parent=1 // pred_fallthru
      _
    %172 = vsyncpa [#allocation3], 1
    %173 = vsyncpa [#allocation6], 1
    %174 = vsyncpa [#allocation4], 1

</llo_original>
